<compile_context>
chip_gen: v6e
topology: v6e:2x2x1
jax: 0.10.0
libtpu: 0.0.40
codegen_flags: <defaults>
</compile_context>

<pallas_src>
import functools

import jax
import jax.numpy as jnp
from jax.experimental import pallas as pl
from jax.experimental.pallas import tpu as pltpu

d_z = 18  # matches the module-level constant in the PyTorch file


def _round_up(v, m):
    return (v + m - 1) // m * m


def _p_forward_kernel(psi_ref, mu_ref, eps_ref, x_ref, u_ref,
                      obs_ref, logits_ref):
    # psi_ref: (1,) SMEM    sampled categorical index (as float)
    # mu_ref:  (1, d_z)     prior-mean sample mu_z (constant block)
    # eps_ref: (TM, d_z)    standard-normal base noise for z
    # x_ref:   (d_z, TN)    fixed covariates self.x (column tile)
    # u_ref:   (TM, TN)     uniform(0,1) base noise for the Bernoulli draw
    scale = jnp.exp(jnp.full((1, 1), psi_ref[0], dtype=jnp.float32))  # exp(psi_z)
    z = mu_ref[...] + scale * eps_ref[...]              # z ~ N(mu_z, exp(psi_z))
    logits = jnp.dot(z, x_ref[...],
                     preferred_element_type=jnp.float32)  # z @ x on the MXU
    probs = jax.nn.sigmoid(logits)                      # Bernoulli(logits=...)
    obs_ref[...] = (u_ref[...] < probs).astype(jnp.float32)
    logits_ref[...] = logits


@functools.partial(jax.jit, static_argnames=("tm", "tn"))
def p_forward(mu_z, psi_z, eps, x, u, *, tm=256, tn=512):
    """Runs the P forward-pass hot path in one gridded Pallas call.

    Args:
      mu_z:  (d_z,) float32
      psi_z: scalar int (categorical sample)
      eps:   (M, d_z) float32 standard normal
      x:     (d_z, N) float32
      u:     (M, N) float32 uniform(0,1)
    Returns:
      obs (M, N) float32 in {0., 1.}, logits (M, N) float32
    """
    M, dz = eps.shape
    _, N = x.shape

    # Tile sizes: TM multiple of 8 (tall when M allows), TN multiple of 128
    # (lane-dense). Pad M / N up to whole tiles; slice outputs back afterwards.
    TM = min(tm, _round_up(M, 8))
    TN = min(tn, _round_up(N, 128))
    M_pad = _round_up(M, TM)
    N_pad = _round_up(N, TN)

    mu2 = mu_z.reshape(1, dz).astype(jnp.float32)
    psi1 = jnp.asarray(psi_z, jnp.float32).reshape(1)

    eps_p = eps.astype(jnp.float32)
    x_p = x.astype(jnp.float32)
    u_p = u.astype(jnp.float32)
    if M_pad != M:
        eps_p = jnp.pad(eps_p, ((0, M_pad - M), (0, 0)))
        u_p = jnp.pad(u_p, ((0, M_pad - M), (0, 0)))
    if N_pad != N:
        x_p = jnp.pad(x_p, ((0, 0), (0, N_pad - N)))
        u_p = jnp.pad(u_p, ((0, 0), (0, N_pad - N)))

    grid = (M_pad // TM, N_pad // TN)

    obs, logits = pl.pallas_call(
        _p_forward_kernel,
        out_shape=(
            jax.ShapeDtypeStruct((M_pad, N_pad), jnp.float32),
            jax.ShapeDtypeStruct((M_pad, N_pad), jnp.float32),
        ),
        grid=grid,
        in_specs=[
            pl.BlockSpec(memory_space=pltpu.MemorySpace.SMEM),   # psi_z scalar
            pl.BlockSpec((1, dz), lambda i, j: (0, 0)),          # mu_z (resident)
            pl.BlockSpec((TM, dz), lambda i, j: (i, 0)),         # eps row tile
            pl.BlockSpec((dz, TN), lambda i, j: (0, j)),         # x col tile
            pl.BlockSpec((TM, TN), lambda i, j: (i, j)),         # u tile
        ],
        out_specs=(
            pl.BlockSpec((TM, TN), lambda i, j: (i, j)),         # obs
            pl.BlockSpec((TM, TN), lambda i, j: (i, j)),         # logits
        ),
        compiler_params=pltpu.CompilerParams(
            dimension_semantics=("parallel", "parallel")),
    )(psi1, mu2, eps_p, x_p, u_p)

    return obs[:M, :N], logits[:M, :N]


if __name__ == "__main__":
    def run_case(key, M, N):
        k_mu, k_psi, k_eps, k_x, k_u = jax.random.split(key, 5)

        # tr.sample('mu_z', Normal(0, 1))
        mu_z = jax.random.normal(k_mu, (d_z,), dtype=jnp.float32)

        # tr.sample('psi_z', Categorical([0.1, 0.5, 0.4, 0.05, 0.05]))
        psi_probs = jnp.array([0.1, 0.5, 0.4, 0.05, 0.05], dtype=jnp.float32)
        psi_z = jax.random.categorical(k_psi, jnp.log(psi_probs))  # int32 scalar

        # Base noise for z ~ Normal(mu_z, exp(psi_z)) over plate_1
        eps = jax.random.normal(k_eps, (M, d_z), dtype=jnp.float32)

        # self.x — fixed covariates (d_z, N)
        x = jax.random.normal(k_x, (d_z, N), dtype=jnp.float32)

        # Base uniforms for obs ~ Bernoulli(logits = z @ x)
        u = jax.random.uniform(k_u, (M, N), dtype=jnp.float32)

        obs, logits = p_forward(mu_z, psi_z, eps, x, u)
        jax.block_until_ready((obs, logits))

        # Pure-JAX reference
        z_ref = mu_z[None, :] + jnp.exp(psi_z.astype(jnp.float32)) * eps
        logits_ref = jnp.dot(z_ref, x, precision=jax.lax.Precision.HIGHEST)
        probs_ref = jax.nn.sigmoid(logits_ref)
        obs_ref = (u < probs_ref).astype(jnp.float32)

        assert jnp.allclose(logits, logits_ref, atol=1e-3, rtol=1e-3), \
            f"logits mismatch at shape ({M},{N})"
        # Tolerance-aware obs check: allow flips only where u sits essentially
        # on the sigmoid decision boundary (ULP-level EUP vs host differences).
        boundary = jnp.abs(u - probs_ref) < 1e-5
        assert bool(jnp.all((obs == obs_ref) | boundary)), \
            f"obs mismatch at shape ({M},{N})"

    key = jax.random.PRNGKey(0)
    k1, k2 = jax.random.split(key)

    # Toy shapes consistent with the model: plate_1 = 8 "users", 32 items.
    run_case(k1, 8, 32)
    # Larger shapes that exercise multi-tile grid + padding (grid = (2, 2)).
    run_case(k2, 300, 700)

    print("KERNEL_OK")
</pallas_src>

<mosaic_0001>
module attributes {stable_mosaic.version = 11 : i64} {
  func.func @_p_forward_kernel(%arg0: i32, %arg1: i32, %arg2: memref<1xf32, #tpu.memory_space<smem>>, %arg3: memref<1x18xf32, #tpu.memory_space<vmem>>, %arg4: memref<8x18xf32, #tpu.memory_space<vmem>>, %arg5: memref<18x128xf32, #tpu.memory_space<vmem>>, %arg6: memref<8x128xf32, #tpu.memory_space<vmem>>, %arg7: memref<8x128xf32, #tpu.memory_space<vmem>>, %arg8: memref<8x128xf32, #tpu.memory_space<vmem>>) attributes {dimension_semantics = [#tpu.dimension_semantics<parallel>, #tpu.dimension_semantics<parallel>], iteration_bounds = array<i64: 1, 1>, scalar_prefetch = 0 : i64, scratch_operands = 0 : i64, tpu.core_type = #tpu.core_type<tc>, window_params = [{transform_indices = @transform_0, window_bounds = array<i64: 1>}, {pipeline_mode = #tpu.pipeline_mode<synchronous>, transform_indices = @transform_1, window_bounds = array<i64: 1, 18>}, {transform_indices = @transform_2, window_bounds = array<i64: 8, 18>}, {transform_indices = @transform_3, window_bounds = array<i64: 18, 128>}, {transform_indices = @transform_4, window_bounds = array<i64: 8, 128>}, {transform_indices = @transform_5, window_bounds = array<i64: 8, 128>}, {transform_indices = @transform_6, window_bounds = array<i64: 8, 128>}]} {
    %c0 = arith.constant 0 : index
    %0 = memref.load %arg2[%c0] : memref<1xf32, #tpu.memory_space<smem>>
    %1 = vector.broadcast %0 : f32 to vector<1x1xf32>
    %2 = math.exp %1 : vector<1x1xf32>
    %c0_0 = arith.constant 0 : index
    %c0_1 = arith.constant 0 : index
    %3 = vector.load %arg3[%c0_0, %c0_1] : memref<1x18xf32, #tpu.memory_space<vmem>>, vector<1x18xf32>
    %c0_2 = arith.constant 0 : index
    %c0_3 = arith.constant 0 : index
    %4 = vector.load %arg4[%c0_2, %c0_3] : memref<8x18xf32, #tpu.memory_space<vmem>>, vector<8x18xf32>
    %5 = vector.broadcast %2 : vector<1x1xf32> to vector<8x18xf32>
    %6 = arith.mulf %5, %4 : vector<8x18xf32>
    %7 = vector.broadcast %3 : vector<1x18xf32> to vector<8x18xf32>
    %8 = arith.addf %7, %6 : vector<8x18xf32>
    %c0_4 = arith.constant 0 : index
    %c0_5 = arith.constant 0 : index
    %9 = vector.load %arg5[%c0_4, %c0_5] : memref<18x128xf32, #tpu.memory_space<vmem>>, vector<18x128xf32>
    %cst = arith.constant dense<0.000000e+00> : vector<8x128xf32>
    %10 = tpu.matmul %8, %9, %cst {dimension_numbers = #tpu.dot_dimension_numbers<[1], [0], [0], [1], [0, 0, 1, 1], [], []>} : vector<8x18xf32>, vector<18x128xf32>, vector<8x128xf32> -> vector<8x128xf32>
    %11 = arith.negf %10 : vector<8x128xf32>
    %12 = math.exp %11 : vector<8x128xf32>
    %cst_6 = arith.constant 1.000000e+00 : f32
    %13 = vector.broadcast %cst_6 : f32 to vector<8x128xf32>
    %14 = arith.addf %13, %12 : vector<8x128xf32>
    %15 = arith.divf %13, %14 : vector<8x128xf32>
    %c0_7 = arith.constant 0 : index
    %c0_8 = arith.constant 0 : index
    %16 = vector.load %arg6[%c0_7, %c0_8] : memref<8x128xf32, #tpu.memory_space<vmem>>, vector<8x128xf32>
    %17 = arith.cmpf olt, %16, %15 : vector<8x128xf32>
    %18 = arith.extui %17 : vector<8x128xi1> to vector<8x128xi32>
    %19 = arith.sitofp %18 : vector<8x128xi32> to vector<8x128xf32>
    %c0_9 = arith.constant 0 : index
    %c0_10 = arith.constant 0 : index
    %20 = vector.load %arg7[%c0_9, %c0_10] : memref<8x128xf32, #tpu.memory_space<vmem>>, vector<8x128xf32>
    tpu.vector_store %arg7[%c0_9, %c0_10], %19 {strides = array<i32>} : memref<8x128xf32, #tpu.memory_space<vmem>>, vector<8x128xf32>,
    %c0_11 = arith.constant 0 : index
    %c0_12 = arith.constant 0 : index
    %21 = vector.load %arg8[%c0_11, %c0_12] : memref<8x128xf32, #tpu.memory_space<vmem>>, vector<8x128xf32>
    tpu.vector_store %arg8[%c0_11, %c0_12], %10 {strides = array<i32>} : memref<8x128xf32, #tpu.memory_space<vmem>>, vector<8x128xf32>,
    return
  }
  func.func @transform_0(%arg0: i32, %arg1: i32) -> i32 {
    %c0_i32 = arith.constant 0 : i32
    %c0_i32_0 = arith.constant 0 : i32
    return %c0_i32 : i32
  }
  func.func @transform_1(%arg0: i32, %arg1: i32) -> (i32, i32) {
    %c0_i32 = arith.constant 0 : i32
    %c0_i32_0 = arith.constant 0 : i32
    %c0_i32_1 = arith.constant 0 : i32
    return %c0_i32, %c0_i32_0 : i32, i32
  }
  func.func @transform_2(%arg0: i32, %arg1: i32) -> (i32, i32) {
    %c0_i32 = arith.constant 0 : i32
    %c0_i32_0 = arith.constant 0 : i32
    return %arg0, %c0_i32 : i32, i32
  }
  func.func @transform_3(%arg0: i32, %arg1: i32) -> (i32, i32) {
    %c0_i32 = arith.constant 0 : i32
    %c0_i32_0 = arith.constant 0 : i32
    return %c0_i32, %arg1 : i32, i32
  }
  func.func @transform_4(%arg0: i32, %arg1: i32) -> (i32, i32) {
    %c0_i32 = arith.constant 0 : i32
    return %arg0, %arg1 : i32, i32
  }
  func.func @transform_5(%arg0: i32, %arg1: i32) -> (i32, i32) {
    %c0_i32 = arith.constant 0 : i32
    return %arg0, %arg1 : i32, i32
  }
  func.func @transform_6(%arg0: i32, %arg1: i32) -> (i32, i32) {
    %c0_i32 = arith.constant 0 : i32
    return %arg0, %arg1 : i32, i32
  }
}

</mosaic_0001>

<llo_original>
// kernel: p_forward.1
$region0: #{p_forward.1}
  #allocation0 [shape = 'u32[]', space=smem, size = 0x4, offset = 0x4, fixed_abs, tag = 'smem constant byte address 0x4 - core index']
  #allocation1 [shape = 'u32[144,128]{1,0:T(1,128)}', space=vmem, size = 0x12000, scoped, tag = 'internal scratch']
  #allocation2 [shape = 'f32[1]{0:T(128)S(6)}', space=smem, size = 0x200, scoped, tag = 'scoped memory for p_forward.1']
  %s0 = inlined_call_operand.<no memory space> [shape: f32[1], index: 0, kind: input, shape index: {}]
  %s1 = inlined_call_operand.vmem [shape: f32[1,18], index: 1, kind: input, shape index: {}]
  %s2 = inlined_call_operand.vmem [shape: f32[8,18], index: 2, kind: input, shape index: {}]
  %s3 = inlined_call_operand.vmem [shape: f32[18,128], index: 3, kind: input, shape index: {}]
  %s4 = inlined_call_operand.vmem [shape: f32[8,128], index: 4, kind: input, shape index: {}]
  %s5 = inlined_call_operand.hbm [shape: f32[8,128], index: 5, kind: output, shape index: {0}]
  %s6 = inlined_call_operand.hbm [shape: f32[8,128], index: 6, kind: output, shape index: {1}]
  %7 = xla_tuple %s5, %s6
  %s8 = sld [smem:[#allocation0]]
  $region38: #{p_forward.1} parent=0
    _
  %s10 = ssub.s32 1, %s8
  %s11 = scalar_select 0, %s10, %s8
  %12 = sst [smem:[#allocation2]] %s0
  $region1: #{p_forward.1} parent=0
    #allocation3 [shape = 'u8[4096]{0}', space=vmem, size = 0x1000, scoped, tag = 'output window, operand 0, single buffered']
    #allocation4 [shape = 's32[1]{0}', space=sflag, size = 0x4, scoped, tag = 'scoped memory for p_forward.1']
    #allocation5 [shape = 'u8[4096]{0}', space=vmem, size = 0x1000, scoped, tag = 'output window, operand 1, single buffered']
    #allocation6 [shape = 's32[1]{0}', space=sflag, size = 0x4, scoped, tag = 'scoped memory for p_forward.1']
    %13 = vsyncpa [#allocation4], 0
    %14 = vsyncpa [#allocation6], 0
    // Predicated region
    $region2: #{p_forward.1} parent=1 // pred_check
      _
    $region3: #{p_forward.1} parent=1 // pred_check_branch
      %16 = sbr.rel (0) target = $region5
    $region4: #{p_forward.1} parent=1 // pred_region
      _
    $region5: #{p_forward.1} parent=1 // pred_fallthru
      _
    // Predicated region
    $region6: #{p_forward.1} parent=1 // pred_check
      _
    $region7: #{p_forward.1} parent=1 // pred_check_branch
      %18 = sbr.rel (0) target = $region9
    $region8: #{p_forward.1} parent=1 // pred_region
      _
    $region9: #{p_forward.1} parent=1 // pred_fallthru
      _
    // Predicated region
    $region10: #{p_forward.1} parent=1 // pred_check
      _
    $region11: #{p_forward.1} parent=1 // pred_check_branch
      %20 = sbr.rel (0) target = $region13
    $region12: #{p_forward.1} parent=1 // pred_region
      _
    $region13: #{p_forward.1} parent=1 // pred_fallthru
      _
    // Predicated region
    $region14: #{p_forward.1} parent=1 // pred_check
      _
    $region15: #{p_forward.1} parent=1 // pred_check_branch
      %22 = sbr.rel (0) target = $region17
    $region16: #{p_forward.1} parent=1 // pred_region
      _
    $region17: #{p_forward.1} parent=1 // pred_fallthru
      _
    // Predicated region
    $region18: #{p_forward.1} parent=1 // pred_check
      _
    $region19: #{p_forward.1} parent=1 // pred_check_branch
      %24 = sbr.rel (0) target = $region21
    $region20: #{p_forward.1} parent=1 // pred_region
      _
    $region21: #{p_forward.1} parent=1 // pred_fallthru
      _
    %s25 = sld [smem:[#allocation2]]
    %v26 = vstv %s25
    %v27 = vmul.f32 %v26, 1.442695
    %v28 = vpow.pop %v27
    %v29 = vld [vmem:[%s1] sm:$0x1]
    %v30 = vld [vmem:[%s2] sm:$0xff]
    %v31 = vmul.f32 %v28, %v30
    %v33 = vlaneseq
    %v34 = vshrl.u32 %v33, 7
    %v35 = vsub.s32 0, %v34
    %v36 = vrot.slane %v29, %v35
    %v38 = vadd.f32 %v36, %v31
    %v39 = vld [vmem:[%s3] sm:$0xff]
    %v40 = vld [vmem:[%s3 + $0x8] sm:$0xff]
    %v41 = vld [vmem:[%s3 + $0x10] sm:$0x3]
    %vm42 = vcmask 146432
    %v44 = vsel %vm42, %v38, 0
    %vm46 = vcmask 1041408
    %v48 = vsel %vm46, %v41, 0
    %50 = vmatprep.subr.mxu0 0.0
    %51 = vmatpush1.msra.mxu0 0.0
    %52 = vmatprep.subr.mxu0 0.0
    %53 = vmatpush1.msra.mxu0 0.0
    %54 = vmatprep.subr.mxu0 0.0
    %55 = vmatpush1.msra.mxu0 0.0
    %56 = vmatprep.subr.mxu0 0.0
    %57 = vmatpush1.msra.mxu0 0.0
    %58 = vmatprep.subr.mxu0 0.0
    %59 = vmatpush1.msra.mxu0 0.0
    %60 = vmatprep.subr.mxu0 0.0
    %61 = vmatpush1.msra.mxu0 0.0
    %62 = vmatprep.subr.mxu0 0.0
    %63 = vmatpush1.msra.mxu0 0.0
    %64 = vmatprep.subr.mxu0 0.0
    %65 = vmatpush1.msra.mxu0 0.0
    %66 = vmatprep.subr.mxu0 0.0
    %67 = vmatpush1.msra.mxu0 0.0
    %68 = vmatprep.subr.mxu0 0.0
    %69 = vmatpush1.msra.mxu0 0.0
    %70 = vmatprep.subr.mxu0 0.0
    %71 = vmatpush1.msra.mxu0 0.0
    %72 = vmatprep.subr.mxu0 0.0
    %73 = vmatpush1.msra.mxu0 0.0
    %74 = vmatprep.subr.mxu0 0.0
    %75 = vmatpush1.msra.mxu0 0.0
    %76 = vmatprep.subr.mxu0 0.0
    %77 = vmatpush1.msra.mxu0 %v48
    %78 = vmatprep.subr.mxu0 0.0
    %79 = vmatpush1.msra.mxu0 %v40
    %80 = vmatprep.subr.mxu0 0.0
    %81 = vmatpush1.msra.mxu0 %v39
    %82 = vmatprep.subr.mxu0 0.0
    %83 = vmatpush2.msra.mxu0 0.0
    %84 = vmatprep.subr.mxu0 0.0
    %85 = vmatpush2.msra.mxu0 0.0
    %86 = vmatprep.subr.mxu0 0.0
    %87 = vmatpush2.msra.mxu0 0.0
    %88 = vmatprep.subr.mxu0 0.0
    %89 = vmatpush2.msra.mxu0 0.0
    %90 = vmatprep.subr.mxu0 0.0
    %91 = vmatpush2.msra.mxu0 0.0
    %92 = vmatprep.subr.mxu0 0.0
    %93 = vmatpush2.msra.mxu0 0.0
    %94 = vmatprep.subr.mxu0 0.0
    %95 = vmatpush2.msra.mxu0 0.0
    %96 = vmatprep.subr.mxu0 0.0
    %97 = vmatpush2.msra.mxu0 0.0
    %98 = vmatprep.subr.mxu0 0.0
    %99 = vmatpush2.msra.mxu0 0.0
    %100 = vmatprep.subr.mxu0 0.0
    %101 = vmatpush2.msra.mxu0 0.0
    %102 = vmatprep.subr.mxu0 0.0
    %103 = vmatpush2.msra.mxu0 0.0
    %104 = vmatprep.subr.mxu0 0.0
    %105 = vmatpush2.msra.mxu0 0.0
    %106 = vmatprep.subr.mxu0 0.0
    %107 = vmatpush2.msra.mxu0 0.0
    %108 = vmatprep.subr.mxu0 0.0
    %109 = vmatpush2.msra.mxu0 0.0
    %110 = vmatprep.subr.mxu0 0.0
    %111 = vmatpush2.msra.mxu0 0.0
    %112 = vmatprep.subr.mxu0 0.0
    %113 = vmatpush2.msra.mxu0 0.0
    %114 = vmatprep.mubr.f32.mxu0 0.0
    %115 = vmatmul.mubr.f32.gmra.mxu0 %v44
    %v116 = vpop.f32.mrf.mxu0
    %v117 = vadd.f32 0.0, %v116
    %v118 = vpop.f32.mrf.mxu0
    %119 = vdwg.mxu0
    %v120 = vxor.u32 %v117, 2147483648
    %v121 = vmul.f32 %v120, 1.442695
    %v122 = vpow.pop %v121
    %v123 = vadd.f32 %v122, 1.0
    %v124 = vrcp.pop %v123
    %v125 = vmul.f32 1.0, %v124
    %v126 = vld [vmem:[%s4] sm:$0xff]
    %vm127 = vcmp.lt.f32.partialorder %v126, %v125
    %v128 = vsel %vm127, 1, 0
    %v129 = vcvt.s32.f32 %v128
    %130 = vst [vmem:[#allocation3] sm:$0xff] %v129
    %131 = vst [vmem:[#allocation5] sm:$0xff] %v117
    // Predicated region
    $region22: #{p_forward.1} parent=1 // pred_check
      _
    $region23: #{p_forward.1} parent=1 // pred_check_branch
      %133 = sbr.rel (0) target = $region25
    $region24: #{p_forward.1} parent=1 // pred_region
      %s135 = ssub.s32 128, 128
      %136 = vsyncadd [#allocation4], %s135
      %s138 = sshll.u32 [#allocation3], 4
      %s139 = int_to_ptr.vmem [resolvable:$true] %s138
      %141 = dma.vmem_to_hbm [thread:$0]  %s139, 128, %s5, [#allocation4]
    $region25: #{p_forward.1} parent=1 // pred_fallthru
      _
    // Predicated region
    $region26: #{p_forward.1} parent=1 // pred_check
      _
    $region27: #{p_forward.1} parent=1 // pred_check_branch
      %143 = sbr.rel (0) target = $region29
    $region28: #{p_forward.1} parent=1 // pred_region
      %s145 = ssub.s32 128, 128
      %146 = vsyncadd [#allocation6], %s145
      %s148 = sshll.u32 [#allocation5], 4
      %s149 = int_to_ptr.vmem [resolvable:$true] %s148
      %151 = dma.vmem_to_hbm [thread:$0]  %s149, 128, %s6, [#allocation6]
    $region29: #{p_forward.1} parent=1 // pred_fallthru
      _
    // Predicated region
    $region30: #{p_forward.1} parent=1 // pred_check
      _
    $region31: #{p_forward.1} parent=1 // pred_check_branch
      %153 = sbr.rel (0) target = $region33
    $region32: #{p_forward.1} parent=1 // pred_region
      %154 = dma.done [#allocation4], 128
    $region33: #{p_forward.1} parent=1 // pred_fallthru
      _
    // Predicated region
    $region34: #{p_forward.1} parent=1 // pred_check
      _
    $region35: #{p_forward.1} parent=1 // pred_check_branch
      %156 = sbr.rel (0) target = $region37
    $region36: #{p_forward.1} parent=1 // pred_region
      %157 = dma.done [#allocation6], 128
    $region37: #{p_forward.1} parent=1 // pred_fallthru
      _
    %158 = vsyncpa [#allocation4], 1
    %159 = vsyncpa [#allocation6], 1

</llo_original>
